<compile_context>
chip_gen: v7x
topology: tpu7x:2x2x1
jax: 0.10.0
libtpu: 0.0.40
codegen_flags: <defaults>
</compile_context>

<pallas_src>
import jax
import jax.numpy as jnp
from jax.experimental import pallas as pl
from jax.experimental.pallas import tpu as pltpu

_LANES = 128
_SUBLANES = 8


def _empirical_sampler_kernel(u_ref, w_ref, m_ref, out_ref):
    """u_ref:  (block_rows, 128) f32 uniforms in [0, 1)   (VMEM)
       w_ref:  (K,) f32 unnormalized category weights      (SMEM)
       m_ref:  (K,) i32 property_map values                (SMEM)
       out_ref:(block_rows, 128) i32 sampled node counts   (VMEM)
    """
    K = w_ref.shape[0]

    # Inclusive CDF as K scalar adds on SMEM values (scalar ALU only; no MXU/XLU).
    cdf = []
    c = w_ref[0]
    cdf.append(c)
    for k in range(1, K):
        c = c + w_ref[k]
        cdf.append(c)
    total = cdf[K - 1]  # exact last CDF entry; guarantees u*total < cdf[K-1] clamps below

    # Scale uniforms to [0, total).  Lane-dense: one vreg covers 1024 samples.
    u = u_ref[...] * total

    # Fused inverse-CDF search + gather (telescoping over the sorted index).
    vals = jnp.zeros(u.shape, jnp.int32) + m_ref[0]
    for k in range(K - 1):
        delta = m_ref[k + 1] - m_ref[k]          # i32 scalar (SMEM)
        vals = vals + jnp.where(u >= cdf[k], delta, 0)
    out_ref[...] = vals


def empirical_sampler(key, property_histograms, property_map, batch_size, *, block_rows=256):
    """Draw `batch_size` samples ~ Categorical(property_histograms), mapped
    through property_map.  Returns int32 (PyTorch returns int64; TPU has no i64).
    Note: like torch.multinomial, assumes weights are non-negative with a
    positive sum (not validated here)."""
    K = int(property_histograms.shape[0])

    # Lane-dense padded layout: rows x 128 samples, rows a multiple of 8.
    rows_needed = max(1, -(-batch_size // _LANES))
    rows_needed = -(-rows_needed // _SUBLANES) * _SUBLANES
    block_rows = min(block_rows, rows_needed)            # block_rows is a multiple of 8
    total_rows = -(-rows_needed // block_rows) * block_rows
    num_blocks = total_rows // block_rows

    u = jax.random.uniform(key, (total_rows, _LANES), dtype=jnp.float32)
    w = property_histograms.astype(jnp.float32).reshape(K)
    m = property_map.astype(jnp.int32).reshape(K)

    out = pl.pallas_call(
        _empirical_sampler_kernel,
        out_shape=jax.ShapeDtypeStruct((total_rows, _LANES), jnp.int32),
        grid=(num_blocks,),
        in_specs=[
            pl.BlockSpec((block_rows, _LANES), lambda i: (i, 0)),        # uniforms (tiled)
            pl.BlockSpec(memory_space=pltpu.MemorySpace.SMEM),           # weights (K,)
            pl.BlockSpec(memory_space=pltpu.MemorySpace.SMEM),           # value map (K,)
        ],
        out_specs=pl.BlockSpec((block_rows, _LANES), lambda i: (i, 0)),
        compiler_params=pltpu.CompilerParams(
            dimension_semantics=("parallel",)),                           # megacore on v7x
    )(u, w, m)
    return out.reshape(-1)[:batch_size]


if __name__ == "__main__":
    key = jax.random.PRNGKey(0)
    k_w, k_u = jax.random.split(key)

    # Deterministic synthetic dataset_info['num_nodes_hist']:
    # node counts 5..16 (K = 12) with random positive weights.
    node_values = jnp.arange(5, 17, dtype=jnp.int32)                        # property_map
    node_weights = jax.random.uniform(k_w, (12,), minval=0.1, maxval=10.0)  # property_histograms

    batch_size = 8
    samples = empirical_sampler(k_u, node_weights, node_values, batch_size)
    samples = jax.block_until_ready(samples)

    assert samples.shape == (batch_size,)
    assert samples.dtype == jnp.int32
    assert bool(jnp.all(jnp.isin(samples, node_values)))
    print("KERNEL_OK")
</pallas_src>

<mosaic_0001>
module attributes {stable_mosaic.version = 11 : i64} {
  func.func @_empirical_sampler_kernel(%arg0: i32, %arg1: memref<8x128xf32, #tpu.memory_space<vmem>>, %arg2: memref<12xf32, #tpu.memory_space<smem>>, %arg3: memref<12xi32, #tpu.memory_space<smem>>, %arg4: memref<8x128xi32, #tpu.memory_space<vmem>>) attributes {dimension_semantics = [#tpu.dimension_semantics<parallel>], iteration_bounds = array<i64: 1>, scalar_prefetch = 0 : i64, scratch_operands = 0 : i64, tpu.core_type = #tpu.core_type<tc>, window_params = [{transform_indices = @transform_0, window_bounds = array<i64: 8, 128>}, {transform_indices = @transform_1, window_bounds = array<i64: 12>}, {transform_indices = @transform_2, window_bounds = array<i64: 12>}, {transform_indices = @transform_3, window_bounds = array<i64: 8, 128>}]} {
    %c0 = arith.constant 0 : index
    %0 = memref.load %arg2[%c0] : memref<12xf32, #tpu.memory_space<smem>>
    %c1 = arith.constant 1 : index
    %1 = memref.load %arg2[%c1] : memref<12xf32, #tpu.memory_space<smem>>
    %2 = arith.addf %0, %1 : f32
    %c2 = arith.constant 2 : index
    %3 = memref.load %arg2[%c2] : memref<12xf32, #tpu.memory_space<smem>>
    %4 = arith.addf %2, %3 : f32
    %c3 = arith.constant 3 : index
    %5 = memref.load %arg2[%c3] : memref<12xf32, #tpu.memory_space<smem>>
    %6 = arith.addf %4, %5 : f32
    %c4 = arith.constant 4 : index
    %7 = memref.load %arg2[%c4] : memref<12xf32, #tpu.memory_space<smem>>
    %8 = arith.addf %6, %7 : f32
    %c5 = arith.constant 5 : index
    %9 = memref.load %arg2[%c5] : memref<12xf32, #tpu.memory_space<smem>>
    %10 = arith.addf %8, %9 : f32
    %c6 = arith.constant 6 : index
    %11 = memref.load %arg2[%c6] : memref<12xf32, #tpu.memory_space<smem>>
    %12 = arith.addf %10, %11 : f32
    %c7 = arith.constant 7 : index
    %13 = memref.load %arg2[%c7] : memref<12xf32, #tpu.memory_space<smem>>
    %14 = arith.addf %12, %13 : f32
    %c8 = arith.constant 8 : index
    %15 = memref.load %arg2[%c8] : memref<12xf32, #tpu.memory_space<smem>>
    %16 = arith.addf %14, %15 : f32
    %c9 = arith.constant 9 : index
    %17 = memref.load %arg2[%c9] : memref<12xf32, #tpu.memory_space<smem>>
    %18 = arith.addf %16, %17 : f32
    %c10 = arith.constant 10 : index
    %19 = memref.load %arg2[%c10] : memref<12xf32, #tpu.memory_space<smem>>
    %20 = arith.addf %18, %19 : f32
    %c11 = arith.constant 11 : index
    %21 = memref.load %arg2[%c11] : memref<12xf32, #tpu.memory_space<smem>>
    %22 = arith.addf %20, %21 : f32
    %c0_0 = arith.constant 0 : index
    %c0_1 = arith.constant 0 : index
    %23 = vector.load %arg1[%c0_0, %c0_1] : memref<8x128xf32, #tpu.memory_space<vmem>>, vector<8x128xf32>
    %24 = vector.broadcast %22 : f32 to vector<8x128xf32>
    %25 = arith.mulf %23, %24 : vector<8x128xf32>
    %c0_i32 = arith.constant 0 : i32
    %26 = vector.broadcast %c0_i32 : i32 to vector<8x128xi32>
    %c0_2 = arith.constant 0 : index
    %27 = memref.load %arg3[%c0_2] : memref<12xi32, #tpu.memory_space<smem>>
    %28 = vector.broadcast %27 : i32 to vector<8x128xi32>
    %29 = arith.addi %26, %28 : vector<8x128xi32>
    %c1_3 = arith.constant 1 : index
    %30 = memref.load %arg3[%c1_3] : memref<12xi32, #tpu.memory_space<smem>>
    %c0_4 = arith.constant 0 : index
    %31 = memref.load %arg3[%c0_4] : memref<12xi32, #tpu.memory_space<smem>>
    %32 = arith.subi %30, %31 : i32
    %33 = vector.broadcast %0 : f32 to vector<8x128xf32>
    %34 = arith.cmpf oge, %25, %33 : vector<8x128xf32>
    %c0_i32_5 = arith.constant 0 : i32
    %35 = vector.broadcast %32 : i32 to vector<8x128xi32>
    %36 = vector.broadcast %c0_i32_5 : i32 to vector<8x128xi32>
    %37 = arith.select %34, %35, %36 : vector<8x128xi1>, vector<8x128xi32>
    %38 = arith.addi %29, %37 : vector<8x128xi32>
    %c2_6 = arith.constant 2 : index
    %39 = memref.load %arg3[%c2_6] : memref<12xi32, #tpu.memory_space<smem>>
    %c1_7 = arith.constant 1 : index
    %40 = memref.load %arg3[%c1_7] : memref<12xi32, #tpu.memory_space<smem>>
    %41 = arith.subi %39, %40 : i32
    %42 = vector.broadcast %2 : f32 to vector<8x128xf32>
    %43 = arith.cmpf oge, %25, %42 : vector<8x128xf32>
    %c0_i32_8 = arith.constant 0 : i32
    %44 = vector.broadcast %41 : i32 to vector<8x128xi32>
    %45 = vector.broadcast %c0_i32_8 : i32 to vector<8x128xi32>
    %46 = arith.select %43, %44, %45 : vector<8x128xi1>, vector<8x128xi32>
    %47 = arith.addi %38, %46 : vector<8x128xi32>
    %c3_9 = arith.constant 3 : index
    %48 = memref.load %arg3[%c3_9] : memref<12xi32, #tpu.memory_space<smem>>
    %c2_10 = arith.constant 2 : index
    %49 = memref.load %arg3[%c2_10] : memref<12xi32, #tpu.memory_space<smem>>
    %50 = arith.subi %48, %49 : i32
    %51 = vector.broadcast %4 : f32 to vector<8x128xf32>
    %52 = arith.cmpf oge, %25, %51 : vector<8x128xf32>
    %c0_i32_11 = arith.constant 0 : i32
    %53 = vector.broadcast %50 : i32 to vector<8x128xi32>
    %54 = vector.broadcast %c0_i32_11 : i32 to vector<8x128xi32>
    %55 = arith.select %52, %53, %54 : vector<8x128xi1>, vector<8x128xi32>
    %56 = arith.addi %47, %55 : vector<8x128xi32>
    %c4_12 = arith.constant 4 : index
    %57 = memref.load %arg3[%c4_12] : memref<12xi32, #tpu.memory_space<smem>>
    %c3_13 = arith.constant 3 : index
    %58 = memref.load %arg3[%c3_13] : memref<12xi32, #tpu.memory_space<smem>>
    %59 = arith.subi %57, %58 : i32
    %60 = vector.broadcast %6 : f32 to vector<8x128xf32>
    %61 = arith.cmpf oge, %25, %60 : vector<8x128xf32>
    %c0_i32_14 = arith.constant 0 : i32
    %62 = vector.broadcast %59 : i32 to vector<8x128xi32>
    %63 = vector.broadcast %c0_i32_14 : i32 to vector<8x128xi32>
    %64 = arith.select %61, %62, %63 : vector<8x128xi1>, vector<8x128xi32>
    %65 = arith.addi %56, %64 : vector<8x128xi32>
    %c5_15 = arith.constant 5 : index
    %66 = memref.load %arg3[%c5_15] : memref<12xi32, #tpu.memory_space<smem>>
    %c4_16 = arith.constant 4 : index
    %67 = memref.load %arg3[%c4_16] : memref<12xi32, #tpu.memory_space<smem>>
    %68 = arith.subi %66, %67 : i32
    %69 = vector.broadcast %8 : f32 to vector<8x128xf32>
    %70 = arith.cmpf oge, %25, %69 : vector<8x128xf32>
    %c0_i32_17 = arith.constant 0 : i32
    %71 = vector.broadcast %68 : i32 to vector<8x128xi32>
    %72 = vector.broadcast %c0_i32_17 : i32 to vector<8x128xi32>
    %73 = arith.select %70, %71, %72 : vector<8x128xi1>, vector<8x128xi32>
    %74 = arith.addi %65, %73 : vector<8x128xi32>
    %c6_18 = arith.constant 6 : index
    %75 = memref.load %arg3[%c6_18] : memref<12xi32, #tpu.memory_space<smem>>
    %c5_19 = arith.constant 5 : index
    %76 = memref.load %arg3[%c5_19] : memref<12xi32, #tpu.memory_space<smem>>
    %77 = arith.subi %75, %76 : i32
    %78 = vector.broadcast %10 : f32 to vector<8x128xf32>
    %79 = arith.cmpf oge, %25, %78 : vector<8x128xf32>
    %c0_i32_20 = arith.constant 0 : i32
    %80 = vector.broadcast %77 : i32 to vector<8x128xi32>
    %81 = vector.broadcast %c0_i32_20 : i32 to vector<8x128xi32>
    %82 = arith.select %79, %80, %81 : vector<8x128xi1>, vector<8x128xi32>
    %83 = arith.addi %74, %82 : vector<8x128xi32>
    %c7_21 = arith.constant 7 : index
    %84 = memref.load %arg3[%c7_21] : memref<12xi32, #tpu.memory_space<smem>>
    %c6_22 = arith.constant 6 : index
    %85 = memref.load %arg3[%c6_22] : memref<12xi32, #tpu.memory_space<smem>>
    %86 = arith.subi %84, %85 : i32
    %87 = vector.broadcast %12 : f32 to vector<8x128xf32>
    %88 = arith.cmpf oge, %25, %87 : vector<8x128xf32>
    %c0_i32_23 = arith.constant 0 : i32
    %89 = vector.broadcast %86 : i32 to vector<8x128xi32>
    %90 = vector.broadcast %c0_i32_23 : i32 to vector<8x128xi32>
    %91 = arith.select %88, %89, %90 : vector<8x128xi1>, vector<8x128xi32>
    %92 = arith.addi %83, %91 : vector<8x128xi32>
    %c8_24 = arith.constant 8 : index
    %93 = memref.load %arg3[%c8_24] : memref<12xi32, #tpu.memory_space<smem>>
    %c7_25 = arith.constant 7 : index
    %94 = memref.load %arg3[%c7_25] : memref<12xi32, #tpu.memory_space<smem>>
    %95 = arith.subi %93, %94 : i32
    %96 = vector.broadcast %14 : f32 to vector<8x128xf32>
    %97 = arith.cmpf oge, %25, %96 : vector<8x128xf32>
    %c0_i32_26 = arith.constant 0 : i32
    %98 = vector.broadcast %95 : i32 to vector<8x128xi32>
    %99 = vector.broadcast %c0_i32_26 : i32 to vector<8x128xi32>
    %100 = arith.select %97, %98, %99 : vector<8x128xi1>, vector<8x128xi32>
    %101 = arith.addi %92, %100 : vector<8x128xi32>
    %c9_27 = arith.constant 9 : index
    %102 = memref.load %arg3[%c9_27] : memref<12xi32, #tpu.memory_space<smem>>
    %c8_28 = arith.constant 8 : index
    %103 = memref.load %arg3[%c8_28] : memref<12xi32, #tpu.memory_space<smem>>
    %104 = arith.subi %102, %103 : i32
    %105 = vector.broadcast %16 : f32 to vector<8x128xf32>
    %106 = arith.cmpf oge, %25, %105 : vector<8x128xf32>
    %c0_i32_29 = arith.constant 0 : i32
    %107 = vector.broadcast %104 : i32 to vector<8x128xi32>
    %108 = vector.broadcast %c0_i32_29 : i32 to vector<8x128xi32>
    %109 = arith.select %106, %107, %108 : vector<8x128xi1>, vector<8x128xi32>
    %110 = arith.addi %101, %109 : vector<8x128xi32>
    %c10_30 = arith.constant 10 : index
    %111 = memref.load %arg3[%c10_30] : memref<12xi32, #tpu.memory_space<smem>>
    %c9_31 = arith.constant 9 : index
    %112 = memref.load %arg3[%c9_31] : memref<12xi32, #tpu.memory_space<smem>>
    %113 = arith.subi %111, %112 : i32
    %114 = vector.broadcast %18 : f32 to vector<8x128xf32>
    %115 = arith.cmpf oge, %25, %114 : vector<8x128xf32>
    %c0_i32_32 = arith.constant 0 : i32
    %116 = vector.broadcast %113 : i32 to vector<8x128xi32>
    %117 = vector.broadcast %c0_i32_32 : i32 to vector<8x128xi32>
    %118 = arith.select %115, %116, %117 : vector<8x128xi1>, vector<8x128xi32>
    %119 = arith.addi %110, %118 : vector<8x128xi32>
    %c11_33 = arith.constant 11 : index
    %120 = memref.load %arg3[%c11_33] : memref<12xi32, #tpu.memory_space<smem>>
    %c10_34 = arith.constant 10 : index
    %121 = memref.load %arg3[%c10_34] : memref<12xi32, #tpu.memory_space<smem>>
    %122 = arith.subi %120, %121 : i32
    %123 = vector.broadcast %20 : f32 to vector<8x128xf32>
    %124 = arith.cmpf oge, %25, %123 : vector<8x128xf32>
    %c0_i32_35 = arith.constant 0 : i32
    %125 = vector.broadcast %122 : i32 to vector<8x128xi32>
    %126 = vector.broadcast %c0_i32_35 : i32 to vector<8x128xi32>
    %127 = arith.select %124, %125, %126 : vector<8x128xi1>, vector<8x128xi32>
    %128 = arith.addi %119, %127 : vector<8x128xi32>
    %c0_36 = arith.constant 0 : index
    %c0_37 = arith.constant 0 : index
    %129 = vector.load %arg4[%c0_36, %c0_37] : memref<8x128xi32, #tpu.memory_space<vmem>>, vector<8x128xi32>
    tpu.vector_store %arg4[%c0_36, %c0_37], %128 {strides = array<i32>} : memref<8x128xi32, #tpu.memory_space<vmem>>, vector<8x128xi32>,
    return
  }
  func.func @transform_0(%arg0: i32) -> (i32, i32) {
    %c0_i32 = arith.constant 0 : i32
    %c0_i32_0 = arith.constant 0 : i32
    return %arg0, %c0_i32 : i32, i32
  }
  func.func @transform_1(%arg0: i32) -> i32 {
    %c0_i32 = arith.constant 0 : i32
    %c0_i32_0 = arith.constant 0 : i32
    return %c0_i32 : i32
  }
  func.func @transform_2(%arg0: i32) -> i32 {
    %c0_i32 = arith.constant 0 : i32
    %c0_i32_0 = arith.constant 0 : i32
    return %c0_i32 : i32
  }
  func.func @transform_3(%arg0: i32) -> (i32, i32) {
    %c0_i32 = arith.constant 0 : i32
    %c0_i32_0 = arith.constant 0 : i32
    return %arg0, %c0_i32 : i32, i32
  }
}

</mosaic_0001>

<llo_original>
// kernel: tpu_custom_call.1
$region0: #{tpu_custom_call.1}
  #allocation0 [shape = 'u32[]', space=smem, size = 0x4, offset = 0x4, fixed_abs, tag = 'smem constant byte address 0x4 - core index']
  #allocation1 [shape = 'u32[144,128]{1,0:T(1,128)}', space=vmem, size = 0x12000, scoped, tag = 'internal scratch']
  %s0 = inlined_call_operand.hbm [shape: f32[8,128], index: 0, kind: input, shape index: {}]
  %s1 = inlined_call_operand.vmem [shape: f32[12], index: 1, kind: input, shape index: {}]
  %s2 = inlined_call_operand.vmem [shape: s32[12], index: 2, kind: input, shape index: {}]
  %s3 = inlined_call_operand.hbm [shape: s32[8,128], index: 3, kind: output, shape index: {}]
  %s4 = sld [smem:[#allocation0]]
  $region34: #{tpu_custom_call.1} parent=0
    _
  %s6 = ssub.s32 1, %s4
  %s7 = scalar_select 0, %s6, %s4
  $region1: #{tpu_custom_call.1} parent=0
    #allocation2 [shape = 'u8[4096]{0}', space=vmem, size = 0x1000, scoped, tag = 'input window, operand 0, single buffered']
    #allocation3 [shape = 's32[1]{0}', space=sflag, size = 0x4, scoped, tag = 'scoped memory for tpu_custom_call.1']
    #allocation4 [shape = 's32[1]{0}', space=sflag, size = 0x4, scoped, tag = 'scoped memory for tpu_custom_call.1']
    #allocation5 [shape = 's32[1]{0}', space=sflag, size = 0x4, scoped, tag = 'scoped memory for tpu_custom_call.1']
    #allocation6 [shape = 'u8[512]{0}', space=smem, size = 0x200, scoped, tag = 'input window, operand 1, single buffered']
    #allocation7 [shape = 'u8[512]{0}', space=smem, size = 0x200, scoped, tag = 'input window, operand 2, single buffered']
    #allocation8 [shape = 's32[1]{0}', space=sflag, size = 0x4, scoped, tag = 'scoped memory for tpu_custom_call.1']
    #allocation9 [shape = 'u8[4096]{0}', space=vmem, size = 0x1000, scoped, tag = 'output window, operand 0, single buffered']
    %8 = vsyncpa [#allocation3], 0
    %9 = vsyncpa [#allocation5], 0
    %10 = vsyncpa [#allocation8], 0
    %11 = vsyncpa [#allocation4], 0
    // Predicated region
    $region2: #{tpu_custom_call.1} parent=1 // pred_check
      _
    $region3: #{tpu_custom_call.1} parent=1 // pred_check_branch
      %13 = sbr.rel (0) target = $region5
    $region4: #{tpu_custom_call.1} parent=1 // pred_region
      %s15 = ssub.s32 128, 128
      %16 = vsyncadd [#allocation3], %s15
      %s18 = sshll.u32 [#allocation2], 4
      %s19 = int_to_ptr.vmem [resolvable:$true] %s18
      %21 = dma.hbm_to_vmem [thread:$0]  %s0, 128, %s19, [#allocation3]
    $region5: #{tpu_custom_call.1} parent=1 // pred_fallthru
      _
    // Predicated region
    $region6: #{tpu_custom_call.1} parent=1 // pred_check
      _
    $region7: #{tpu_custom_call.1} parent=1 // pred_check_branch
      %23 = sbr.rel (0) target = $region9
    $region8: #{tpu_custom_call.1} parent=1 // pred_region
      %s25 = ssub.s32 16, 16
      %26 = vsyncadd [#allocation5], %s25
      %s28 = sshll.u32 %s1, 4
      %s29 = int_to_ptr.vmem [resolvable:$true] %s28
      %31 = dma.vmem_to_smem %s29, 16, [#allocation6], [#allocation5]
    $region9: #{tpu_custom_call.1} parent=1 // pred_fallthru
      _
    // Predicated region
    $region10: #{tpu_custom_call.1} parent=1 // pred_check
      _
    $region11: #{tpu_custom_call.1} parent=1 // pred_check_branch
      %33 = sbr.rel (0) target = $region13
    $region12: #{tpu_custom_call.1} parent=1 // pred_region
      %s35 = ssub.s32 16, 16
      %36 = vsyncadd [#allocation8], %s35
      %s38 = sshll.u32 %s2, 4
      %s39 = int_to_ptr.vmem [resolvable:$true] %s38
      %41 = dma.vmem_to_smem %s39, 16, [#allocation7], [#allocation8]
    $region13: #{tpu_custom_call.1} parent=1 // pred_fallthru
      _
    // Predicated region
    $region14: #{tpu_custom_call.1} parent=1 // pred_check
      _
    $region15: #{tpu_custom_call.1} parent=1 // pred_check_branch
      %43 = sbr.rel (0) target = $region17
    $region16: #{tpu_custom_call.1} parent=1 // pred_region
      %44 = dma.done [#allocation3], 128
    $region17: #{tpu_custom_call.1} parent=1 // pred_fallthru
      _
    // Predicated region
    $region18: #{tpu_custom_call.1} parent=1 // pred_check
      _
    $region19: #{tpu_custom_call.1} parent=1 // pred_check_branch
      %46 = sbr.rel (0) target = $region21
    $region20: #{tpu_custom_call.1} parent=1 // pred_region
      %47 = dma.done [#allocation5], 16
    $region21: #{tpu_custom_call.1} parent=1 // pred_fallthru
      _
    // Predicated region
    $region22: #{tpu_custom_call.1} parent=1 // pred_check
      _
    $region23: #{tpu_custom_call.1} parent=1 // pred_check_branch
      %49 = sbr.rel (0) target = $region25
    $region24: #{tpu_custom_call.1} parent=1 // pred_region
      %50 = dma.done [#allocation8], 16
    $region25: #{tpu_custom_call.1} parent=1 // pred_fallthru
      _
    %51 = sfence
    %s52 = sld [smem:[#allocation6]]
    %s53 = sld [smem:[#allocation6 + $0x1]]
    %s54 = sadd.f32 %s52, %s53
    %s55 = sld [smem:[#allocation6 + $0x2]]
    %s56 = sadd.f32 %s54, %s55
    %s57 = sld [smem:[#allocation6 + $0x3]]
    %s58 = sadd.f32 %s56, %s57
    %s59 = sld [smem:[#allocation6 + $0x4]]
    %s60 = sadd.f32 %s58, %s59
    %s61 = sld [smem:[#allocation6 + $0x5]]
    %s62 = sadd.f32 %s60, %s61
    %s63 = sld [smem:[#allocation6 + $0x6]]
    %s64 = sadd.f32 %s62, %s63
    %s65 = sld [smem:[#allocation6 + $0x7]]
    %s66 = sadd.f32 %s64, %s65
    %s67 = sld [smem:[#allocation6 + $0x8]]
    %s68 = sadd.f32 %s66, %s67
    %s69 = sld [smem:[#allocation6 + $0x9]]
    %s70 = sadd.f32 %s68, %s69
    %s71 = sld [smem:[#allocation6 + $0xa]]
    %s72 = sadd.f32 %s70, %s71
    %s73 = sld [smem:[#allocation6 + $0xb]]
    %s74 = sadd.f32 %s72, %s73
    %v75 = vld [vmem:[#allocation2] sm:$0xff]
    %v76 = vstv %s74
    %v77 = vmul.f32 %v75, %v76
    %s78 = sld [smem:[#allocation7]]
    %v79 = vstv %s78
    %s80 = sld [smem:[#allocation7 + $0x1]]
    %s81 = ssub.s32 %s80, %s78
    %v82 = vstv %s52
    %vm83 = vcmp.ge.f32.partialorder %v77, %v82
    %v84 = vstv %s81
    %v85 = vsel %vm83, %v84, 0
    %v86 = vadd.s32 %v79, %v85
    %s87 = sld [smem:[#allocation7 + $0x2]]
    %s88 = ssub.s32 %s87, %s80
    %v89 = vstv %s54
    %vm90 = vcmp.ge.f32.partialorder %v77, %v89
    %v91 = vstv %s88
    %v92 = vsel %vm90, %v91, 0
    %v93 = vadd.s32 %v86, %v92
    %s94 = sld [smem:[#allocation7 + $0x3]]
    %s95 = ssub.s32 %s94, %s87
    %v96 = vstv %s56
    %vm97 = vcmp.ge.f32.partialorder %v77, %v96
    %v98 = vstv %s95
    %v99 = vsel %vm97, %v98, 0
    %v100 = vadd.s32 %v93, %v99
    %s101 = sld [smem:[#allocation7 + $0x4]]
    %s102 = ssub.s32 %s101, %s94
    %v103 = vstv %s58
    %vm104 = vcmp.ge.f32.partialorder %v77, %v103
    %v105 = vstv %s102
    %v106 = vsel %vm104, %v105, 0
    %v107 = vadd.s32 %v100, %v106
    %s108 = sld [smem:[#allocation7 + $0x5]]
    %s109 = ssub.s32 %s108, %s101
    %v110 = vstv %s60
    %vm111 = vcmp.ge.f32.partialorder %v77, %v110
    %v112 = vstv %s109
    %v113 = vsel %vm111, %v112, 0
    %v114 = vadd.s32 %v107, %v113
    %s115 = sld [smem:[#allocation7 + $0x6]]
    %s116 = ssub.s32 %s115, %s108
    %v117 = vstv %s62
    %vm118 = vcmp.ge.f32.partialorder %v77, %v117
    %v119 = vstv %s116
    %v120 = vsel %vm118, %v119, 0
    %v121 = vadd.s32 %v114, %v120
    %s122 = sld [smem:[#allocation7 + $0x7]]
    %s123 = ssub.s32 %s122, %s115
    %v124 = vstv %s64
    %vm125 = vcmp.ge.f32.partialorder %v77, %v124
    %v126 = vstv %s123
    %v127 = vsel %vm125, %v126, 0
    %v128 = vadd.s32 %v121, %v127
    %s129 = sld [smem:[#allocation7 + $0x8]]
    %s130 = ssub.s32 %s129, %s122
    %v131 = vstv %s66
    %vm132 = vcmp.ge.f32.partialorder %v77, %v131
    %v133 = vstv %s130
    %v134 = vsel %vm132, %v133, 0
    %v135 = vadd.s32 %v128, %v134
    %s136 = sld [smem:[#allocation7 + $0x9]]
    %s137 = ssub.s32 %s136, %s129
    %v138 = vstv %s68
    %vm139 = vcmp.ge.f32.partialorder %v77, %v138
    %v140 = vstv %s137
    %v141 = vsel %vm139, %v140, 0
    %v142 = vadd.s32 %v135, %v141
    %s143 = sld [smem:[#allocation7 + $0xa]]
    %s144 = ssub.s32 %s143, %s136
    %v145 = vstv %s70
    %vm146 = vcmp.ge.f32.partialorder %v77, %v145
    %v147 = vstv %s144
    %v148 = vsel %vm146, %v147, 0
    %v149 = vadd.s32 %v142, %v148
    %s150 = sld [smem:[#allocation7 + $0xb]]
    %s151 = ssub.s32 %s150, %s143
    %v152 = vstv %s72
    %vm153 = vcmp.ge.f32.partialorder %v77, %v152
    %v154 = vstv %s151
    %v155 = vsel %vm153, %v154, 0
    %v156 = vadd.s32 %v149, %v155
    %157 = vst [vmem:[#allocation9] sm:$0xff] %v156
    // Predicated region
    $region26: #{tpu_custom_call.1} parent=1 // pred_check
      _
    $region27: #{tpu_custom_call.1} parent=1 // pred_check_branch
      %159 = sbr.rel (0) target = $region29
    $region28: #{tpu_custom_call.1} parent=1 // pred_region
      %s161 = ssub.s32 128, 128
      %162 = vsyncadd [#allocation4], %s161
      %s164 = sshll.u32 [#allocation9], 4
      %s165 = int_to_ptr.vmem [resolvable:$true] %s164
      %167 = dma.vmem_to_hbm [thread:$0]  %s165, 128, %s3, [#allocation4]
    $region29: #{tpu_custom_call.1} parent=1 // pred_fallthru
      _
    // Predicated region
    $region30: #{tpu_custom_call.1} parent=1 // pred_check
      _
    $region31: #{tpu_custom_call.1} parent=1 // pred_check_branch
      %169 = sbr.rel (0) target = $region33
    $region32: #{tpu_custom_call.1} parent=1 // pred_region
      %170 = dma.done [#allocation4], 128
    $region33: #{tpu_custom_call.1} parent=1 // pred_fallthru
      _
    %171 = vsyncpa [#allocation3], 1
    %172 = vsyncpa [#allocation4], 1
    %173 = vsyncpa [#allocation5], 1
    %174 = vsyncpa [#allocation8], 1

</llo_original>
